<compile_context>
chip_gen: v7x
topology: tpu7x:2x2x1
jax: 0.10.0
libtpu: 0.0.40
codegen_flags: <defaults>
</compile_context>

<pallas_src>
import functools

import jax
import jax.numpy as jnp
from jax.experimental import pallas as pl
from jax.experimental.pallas import tpu as pltpu


def _softmax_dropout_matmul_kernel(seed_ref, scores_ref, values_ref, out_ref, *,
                                   dropout_p: float, training: bool,
                                   heads_per_block: int):
    # scores_ref: (Hb, Tq, S), values_ref: (Hb, S, D), out_ref: (1, Tq, Hb*D)
    if training and dropout_p > 0.0:
        # Unique PRNG stream per grid step, mixed with the externally supplied seed.
        step = pl.program_id(0) * pl.num_programs(1) + pl.program_id(1)
        pltpu.prng_seed(seed_ref[0] + step)
        keep_scale = jnp.float32(1.0 / (1.0 - dropout_p))
        drop_threshold = jnp.uint32(int(round(dropout_p * (2 ** 32))))

    outs = []
    for h in range(heads_per_block):
        # Numerically-stable softmax over the last axis, in f32 (VPU/EUP path).
        s = scores_ref[h].astype(jnp.float32)                       # (Tq, S)
        m = jnp.max(s, axis=-1, keepdims=True)
        e = jnp.exp(s - m)
        inv = pl.reciprocal(jnp.sum(e, axis=-1, keepdims=True), approx=True)

        if training and dropout_p > 0.0:
            # TODO(synk): PyTorch's dropout RNG stream cannot be reproduced
            # bit-exactly; TPU hardware PRNG gives the same distribution.
            bits = pltpu.bitcast(pltpu.prng_random_bits(e.shape), jnp.uint32)
            e = jnp.where(bits >= drop_threshold, e, 0.0)
            inv = inv * keep_scale      # fold 1/(1-p) into the softmax rescale

        p = (e * inv).astype(jnp.bfloat16)                          # MXU operand
        v = values_ref[h].astype(jnp.bfloat16)                      # (S, D)
        outs.append(jnp.dot(p, v, preferred_element_type=jnp.float32))

    # Lane-dense store: (Tq, Hb*D) — full-width vst instead of masked 64-lane stores.
    out_ref[0] = jnp.concatenate(outs, axis=-1).astype(out_ref.dtype)


def softmax_dropout_matmul(scores, values, *, dropout_p=0.1, training=False, seed=0):
    """scores: [B, H, S, S], values: [B, H, S, D] -> [B, H, S, D]."""
    B, H, S, S2 = scores.shape
    assert S == S2, "softmax/matmul expects square score matrices"
    Bv, Hv, Sv, D = values.shape
    assert (B, H, S) == (Bv, Hv, Sv)

    BH = B * H
    # Two D=64 heads per step -> 128-lane output tile; even step count for v7x.
    Hb = 2 if BH % 2 == 0 else 1
    # Query-row tiling keeps the scores block bounded when S grows (v7x VMEM).
    Tq = 128 if S % 128 == 0 else S

    scores_f = scores.reshape(BH, S, S)
    values_f = values.reshape(BH, S, D)
    seed_arr = jnp.asarray([seed], dtype=jnp.int32)
    out_dtype = scores.dtype

    kernel = functools.partial(
        _softmax_dropout_matmul_kernel,
        dropout_p=float(dropout_p), training=bool(training), heads_per_block=Hb)

    itemsize = jnp.dtype(out_dtype).itemsize
    cost = pl.CostEstimate(
        flops=2 * BH * S * S * D,
        transcendentals=BH * S * S,
        bytes_accessed=int(scores_f.size) * scores_f.dtype.itemsize
        + int(values_f.size) * values_f.dtype.itemsize
        + BH * S * D * itemsize)

    out_f = pl.pallas_call(
        kernel,
        out_shape=jax.ShapeDtypeStruct((BH // Hb, S, Hb * D), out_dtype),
        grid_spec=pltpu.PrefetchScalarGridSpec(
            num_scalar_prefetch=1,
            grid=(BH // Hb, S // Tq),
            in_specs=[
                pl.BlockSpec((Hb, Tq, S), lambda i, j, seed_ref: (i, j, 0)),
                pl.BlockSpec((Hb, S, D), lambda i, j, seed_ref: (i, 0, 0)),
            ],
            out_specs=pl.BlockSpec((1, Tq, Hb * D), lambda i, j, seed_ref: (i, j, 0)),
        ),
        compiler_params=pltpu.CompilerParams(
            dimension_semantics=("parallel", "parallel")),
        cost_estimate=cost,
    )(seed_arr, scores_f, values_f)

    # Unpack lane-dense [BH/Hb, S, Hb*D] -> [B, H, S, D] (layout plumbing only).
    out = out_f.reshape(BH // Hb, S, Hb, D).transpose(0, 2, 1, 3).reshape(B, H, S, D)
    return out


if __name__ == "__main__":
    # Small shapes consistent with the module's [1, 12, 384, {384, 64}] pattern.
    B, H, S, D = 1, 4, 256, 64

    key = jax.random.PRNGKey(0)
    k1, k2 = jax.random.split(key)
    x513 = jax.random.normal(k1, (B, H, S, S), dtype=jnp.float32)  # attention scores
    x503 = jax.random.normal(k2, (B, H, S, D), dtype=jnp.float32)  # values

    out = softmax_dropout_matmul(x513, x503, dropout_p=0.1, training=False)
    out = jax.block_until_ready(out)

    # Reference (eval-mode dropout == identity). bf16 MXU operands + approx
    # reciprocal give ~1e-3..1e-2 relative error, so use a loosened tolerance.
    ref = jnp.einsum("bhqk,bhkd->bhqd", jax.nn.softmax(x513, axis=-1), x503)
    assert out.shape == (B, H, S, D)
    assert jnp.allclose(out, ref, atol=3e-2, rtol=3e-2), \
        float(jnp.max(jnp.abs(out - ref)))

    print("KERNEL_OK")
</pallas_src>

<mosaic_0001>
module attributes {stable_mosaic.version = 11 : i64} {
  func.func @_softmax_dropout_matmul_kernel(%arg0: i32, %arg1: i32, %arg2: memref<1xi32, #tpu.memory_space<smem>>, %arg3: memref<2x128x256xf32, #tpu.memory_space<vmem>>, %arg4: memref<2x256x64xf32, #tpu.memory_space<vmem>>, %arg5: memref<1x128x128xf32, #tpu.memory_space<vmem>>) attributes {dimension_semantics = [#tpu.dimension_semantics<parallel>, #tpu.dimension_semantics<parallel>], iteration_bounds = array<i64: 2, 2>, scalar_prefetch = 1 : i64, scratch_operands = 0 : i64, tpu.core_type = #tpu.core_type<tc>, window_params = [{transform_indices = @transform_0, window_bounds = array<i64: 2, 128, 256>}, {transform_indices = @transform_1, window_bounds = array<i64: 2, 256, 64>}, {transform_indices = @transform_2, window_bounds = array<i64: 1, 128, 128>}]} {
    %c0 = arith.constant 0 : index
    %c0_0 = arith.constant 0 : index
    %c0_1 = arith.constant 0 : index
    %0 = vector.load %arg3[%c0, %c0_0, %c0_1] : memref<2x128x256xf32, #tpu.memory_space<vmem>>, vector<1x128x256xf32>
    %1 = vector.shape_cast %0 : vector<1x128x256xf32> to vector<128x256xf32>
    %cst = arith.constant dense<0xFF800000> : vector<128xf32>
    %2 = vector.multi_reduction <maximumf>, %1, %cst [1] : vector<128x256xf32> to vector<128xf32>
    %3 = vector.shape_cast %2 : vector<128xf32> to vector<128x1xf32>
    %4 = vector.broadcast %3 : vector<128x1xf32> to vector<128x256xf32>
    %5 = arith.subf %1, %4 : vector<128x256xf32>
    %6 = math.exp %5 : vector<128x256xf32>
    %cst_2 = arith.constant dense<0.000000e+00> : vector<128xf32>
    %7 = vector.multi_reduction <add>, %6, %cst_2 [1] : vector<128x256xf32> to vector<128xf32>
    %8 = vector.shape_cast %7 : vector<128xf32> to vector<128x1xf32>
    %9 = tpu.reciprocal %8 {approx = true} : vector<128x1xf32> -> vector<128x1xf32>
    %10 = vector.broadcast %9 : vector<128x1xf32> to vector<128x256xf32>
    %11 = arith.mulf %6, %10 : vector<128x256xf32>
    %12 = arith.truncf %11 : vector<128x256xf32> to vector<128x256xbf16>
    %c0_3 = arith.constant 0 : index
    %c0_4 = arith.constant 0 : index
    %c0_5 = arith.constant 0 : index
    %13 = vector.load %arg4[%c0_3, %c0_4, %c0_5] : memref<2x256x64xf32, #tpu.memory_space<vmem>>, vector<1x256x64xf32>
    %14 = vector.shape_cast %13 : vector<1x256x64xf32> to vector<256x64xf32>
    %15 = arith.truncf %14 : vector<256x64xf32> to vector<256x64xbf16>
    %cst_6 = arith.constant dense<0.000000e+00> : vector<128x64xf32>
    %16 = tpu.matmul %12, %15, %cst_6 {dimension_numbers = #tpu.dot_dimension_numbers<[1], [0], [0], [1], [0, 0, 1, 1], [], []>} : vector<128x256xbf16>, vector<256x64xbf16>, vector<128x64xf32> -> vector<128x64xf32>
    %c1 = arith.constant 1 : index
    %c0_7 = arith.constant 0 : index
    %c0_8 = arith.constant 0 : index
    %17 = vector.load %arg3[%c1, %c0_7, %c0_8] : memref<2x128x256xf32, #tpu.memory_space<vmem>>, vector<1x128x256xf32>
    %18 = vector.shape_cast %17 : vector<1x128x256xf32> to vector<128x256xf32>
    %cst_9 = arith.constant dense<0xFF800000> : vector<128xf32>
    %19 = vector.multi_reduction <maximumf>, %18, %cst_9 [1] : vector<128x256xf32> to vector<128xf32>
    %20 = vector.shape_cast %19 : vector<128xf32> to vector<128x1xf32>
    %21 = vector.broadcast %20 : vector<128x1xf32> to vector<128x256xf32>
    %22 = arith.subf %18, %21 : vector<128x256xf32>
    %23 = math.exp %22 : vector<128x256xf32>
    %cst_10 = arith.constant dense<0.000000e+00> : vector<128xf32>
    %24 = vector.multi_reduction <add>, %23, %cst_10 [1] : vector<128x256xf32> to vector<128xf32>
    %25 = vector.shape_cast %24 : vector<128xf32> to vector<128x1xf32>
    %26 = tpu.reciprocal %25 {approx = true} : vector<128x1xf32> -> vector<128x1xf32>
    %27 = vector.broadcast %26 : vector<128x1xf32> to vector<128x256xf32>
    %28 = arith.mulf %23, %27 : vector<128x256xf32>
    %29 = arith.truncf %28 : vector<128x256xf32> to vector<128x256xbf16>
    %c1_11 = arith.constant 1 : index
    %c0_12 = arith.constant 0 : index
    %c0_13 = arith.constant 0 : index
    %30 = vector.load %arg4[%c1_11, %c0_12, %c0_13] : memref<2x256x64xf32, #tpu.memory_space<vmem>>, vector<1x256x64xf32>
    %31 = vector.shape_cast %30 : vector<1x256x64xf32> to vector<256x64xf32>
    %32 = arith.truncf %31 : vector<256x64xf32> to vector<256x64xbf16>
    %cst_14 = arith.constant dense<0.000000e+00> : vector<128x64xf32>
    %33 = tpu.matmul %29, %32, %cst_14 {dimension_numbers = #tpu.dot_dimension_numbers<[1], [0], [0], [1], [0, 0, 1, 1], [], []>} : vector<128x256xbf16>, vector<256x64xbf16>, vector<128x64xf32> -> vector<128x64xf32>
    %34 = tpu.concatenate %16, %33 in 1 : vector<128x64xf32>, vector<128x64xf32> -> vector<128x128xf32>
    %c0_15 = arith.constant 0 : index
    %c0_16 = arith.constant 0 : index
    %c0_17 = arith.constant 0 : index
    %35 = vector.load %arg5[%c0_15, %c0_16, %c0_17] : memref<1x128x128xf32, #tpu.memory_space<vmem>>, vector<1x128x128xf32>
    %36 = vector.shape_cast %35 : vector<1x128x128xf32> to vector<128x128xf32>
    %37 = vector.shape_cast %34 : vector<128x128xf32> to vector<1x128x128xf32>
    tpu.vector_store %arg5[%c0_15, %c0_16, %c0_17], %37 {strides = array<i32>} : memref<1x128x128xf32, #tpu.memory_space<vmem>>, vector<1x128x128xf32>,
    return
  }
  func.func @transform_0(%arg0: i32, %arg1: i32, %arg2: memref<1xi32, #tpu.memory_space<smem>>) -> (i32, i32, i32) {
    %c0_i32 = arith.constant 0 : i32
    %c0_i32_0 = arith.constant 0 : i32
    return %arg0, %arg1, %c0_i32 : i32, i32, i32
  }
  func.func @transform_1(%arg0: i32, %arg1: i32, %arg2: memref<1xi32, #tpu.memory_space<smem>>) -> (i32, i32, i32) {
    %c0_i32 = arith.constant 0 : i32
    %c0_i32_0 = arith.constant 0 : i32
    %c0_i32_1 = arith.constant 0 : i32
    return %arg0, %c0_i32, %c0_i32_0 : i32, i32, i32
  }
  func.func @transform_2(%arg0: i32, %arg1: i32, %arg2: memref<1xi32, #tpu.memory_space<smem>>) -> (i32, i32, i32) {
    %c0_i32 = arith.constant 0 : i32
    %c0_i32_0 = arith.constant 0 : i32
    return %arg0, %arg1, %c0_i32 : i32, i32, i32
  }
}

</mosaic_0001>

<llo_original>
// kernel: tpu_custom_call.1
$region0: #{tpu_custom_call.1}
  #allocation0 [shape = 'u32[]', space=smem, size = 0x4, offset = 0x4, fixed_abs, tag = 'smem constant byte address 0x4 - core index']
  #allocation1 [shape = 'u32[144,128]{1,0:T(1,128)}', space=vmem, size = 0x12000, scoped, tag = 'internal scratch']
  #allocation2 [shape = 's32[1]{0}', space=sflag, size = 0x4, scoped, tag = 'scoped memory for tpu_custom_call.1']
  #allocation3 [shape = 's32[1]{0:T(128)S(6)}', space=smem, size = 0x200, scoped, tag = 'prefetched SMEM operand 0']
  #allocation8 [shape = 's32[]', space=sflag, size = 0x4, offset = 0, fixed_abs, tag = 'sflag constant byte address 0x0 - dummy sync flag']
  %s0 = inlined_call_operand.<no memory space> [shape: s32[1], index: 0, kind: input, shape index: {}]
  %s1 = inlined_call_operand.hbm [shape: f32[4,256,256], index: 1, kind: input, shape index: {}]
  %s2 = inlined_call_operand.vmem [shape: f32[4,256,64], index: 2, kind: input, shape index: {}]
  %s3 = inlined_call_operand.hbm [shape: f32[2,256,128], index: 3, kind: output, shape index: {}]
  %s4 = sld [smem:[#allocation0]]
  $region45: #{tpu_custom_call.1} parent=0
    _
  %s6 = ssub.s32 1, %s4
  %s7 = scalar_select 0, %s6, %s4
  %8 = sst [smem:[#allocation3]] %s0
  $region1: #{tpu_custom_call.1} parent=0
    #allocation4 [shape = 'u8[524288]{0}', space=vmem, size = 0x80000, scoped, tag = 'input window, operand 1']
    #allocation5 [shape = 's32[2]{0}', space=sflag, size = 0x8, scoped, tag = 'scoped memory for tpu_custom_call.1']
    #allocation6 [shape = 's32[2]{0}', space=sflag, size = 0x8, scoped, tag = 'scoped memory for tpu_custom_call.1']
    #allocation7 [shape = 'u8[131072]{0}', space=vmem, size = 0x20000, scoped, tag = 'output window, operand 0']
    %9 = vsyncpa [#allocation5], 0
    %s10 = scalar_lea.sflag [#allocation5], 1
    %11 = vsyncpa %s10, 0
    %12 = vsyncpa [#allocation6], 0
    %s13 = scalar_lea.sflag [#allocation6], 1
    %14 = vsyncpa %s13, 0
    loop: start=0, step=1, limit=6
    $region2: #{tpu_custom_call.1} parent=1 // loop_pre_header
      _
    $region3: #{tpu_custom_call.1} parent=1 // loop_header
      %s16 = sphi 0, %s20
      %p17 = scmp.ge.s32.totalorder %s16, 6
      %s23 = sphi 0, %s35
      %s24 = sphi 0, %s31
      %s25 = sphi 0, %s23
      %s26 = sphi 0, %s24
      %s27 = sphi 0, %s25
      %s28 = sphi 0, %s26
      %s40 = sphi 0, %s42
      %s43 = sphi 0, %s40
      %s44 = sphi 0, %s43
      %s60 = sphi 0, %s44
      %s66 = sphi 0, %s68
      %s69 = sphi 0, %s66
      %s70 = sphi 0, %s69
      %s86 = sphi 0, %s70
      %s94 = sphi 0, %s96
      %s97 = sphi 0, %s94
      %s98 = sphi 0, %s97
      %s114 = sphi 0, %s98
    $region4: #{tpu_custom_call.1} parent=1 // loop_header_branch
      %19 = sbr.rel (%p17) target = $region8
    $region5: #{tpu_custom_call.1} parent=1 // loop_body
      %s21 = ssub.s32 %s16, 1
      %s22 = ssub.s32 %s16, 2
      %s29 = sadd.s32 1, %s24
      %p30 = scmp.ge.s32.totalorder %s29, 2
      %s31 = scalar_select %p30, 0, %s29
      %s32 = sadd.s32 1, %s23
      %s33 = scalar_select %p30, %s32, %s23
      %p34 = scmp.ge.s32.totalorder %s33, 2
      %s35 = scalar_select %p34, 0, %s33
      %s36 = ssub.s32 %s23, %s35
      %s37 = ssub.s32 %s24, %s31
      %s38 = sor.u32 %s36, %s37
      %p39 = scmp.eq.s32.totalorder %s38, 0
      %s41 = sadd.s32 %s40, 1
      %s42 = scalar_select %p39, %s40, %s41
      %p45 = pneg %p39
      %p46 = scmp.eq.s32.totalorder %s16, 3
      %p47 = por %p45, %p46
      %p48 = scmp.ne.s32.totalorder %s40, %s43
      %p49 = scmp.eq.s32.totalorder %s16, 0
      %p50 = por %p48, %p49
      %p51 = scmp.ne.s32.totalorder %s40, %s43
      %p52 = scmp.eq.s32.totalorder %s21, 3
      %p53 = por %p51, %p52
      %p54 = scmp.ne.s32.totalorder %s43, %s44
      %p55 = scmp.eq.s32.totalorder %s21, 0
      %p56 = por %p54, %p55
      %p57 = scmp.ne.s32.totalorder %s43, %s44
      %p58 = scmp.eq.s32.totalorder %s22, 3
      %p59 = por %p57, %p58
      %p61 = scmp.ne.s32.totalorder %s44, %s60
      %p62 = scmp.eq.s32.totalorder %s22, 0
      %p63 = por %p61, %p62
      %s64 = ssub.s32 %s23, %s35
      %p65 = scmp.eq.s32.totalorder %s64, 0
      %s67 = sadd.s32 %s66, 1
      %s68 = scalar_select %p65, %s66, %s67
      %p71 = pneg %p65
      %p72 = scmp.eq.s32.totalorder %s16, 3
      %p73 = por %p71, %p72
      %p74 = scmp.ne.s32.totalorder %s66, %s69
      %p75 = scmp.eq.s32.totalorder %s16, 0
      %p76 = por %p74, %p75
      %p77 = scmp.ne.s32.totalorder %s66, %s69
      %p78 = scmp.eq.s32.totalorder %s21, 3
      %p79 = por %p77, %p78
      %p80 = scmp.ne.s32.totalorder %s69, %s70
      %p81 = scmp.eq.s32.totalorder %s21, 0
      %p82 = por %p80, %p81
      %p83 = scmp.ne.s32.totalorder %s69, %s70
      %p84 = scmp.eq.s32.totalorder %s22, 3
      %p85 = por %p83, %p84
      %p87 = scmp.ne.s32.totalorder %s70, %s86
      %p88 = scmp.eq.s32.totalorder %s22, 0
      %p89 = por %p87, %p88
      %s90 = ssub.s32 %s23, %s35
      %s91 = ssub.s32 %s24, %s31
      %s92 = sor.u32 %s90, %s91
      %p93 = scmp.eq.s32.totalorder %s92, 0
      %s95 = sadd.s32 %s94, 1
      %s96 = scalar_select %p93, %s94, %s95
      %p99 = pneg %p93
      %p100 = scmp.eq.s32.totalorder %s16, 3
      %p101 = por %p99, %p100
      %p102 = scmp.ne.s32.totalorder %s94, %s97
      %p103 = scmp.eq.s32.totalorder %s16, 0
      %p104 = por %p102, %p103
      %p105 = scmp.ne.s32.totalorder %s94, %s97
      %p106 = scmp.eq.s32.totalorder %s21, 3
      %p107 = por %p105, %p106
      %p108 = scmp.ne.s32.totalorder %s97, %s98
      %p109 = scmp.eq.s32.totalorder %s21, 0
      %p110 = por %p108, %p109
      %p111 = scmp.ne.s32.totalorder %s97, %s98
      %p112 = scmp.eq.s32.totalorder %s22, 3
      %p113 = por %p111, %p112
      %p115 = scmp.ne.s32.totalorder %s98, %s114
      %p116 = scmp.eq.s32.totalorder %s22, 0
      %p117 = por %p115, %p116
      %p118 = scmp.le.s32.totalorder 1, %s16
      %p119 = scmp.lt.s32.totalorder %s16, 5
      %p120 = pnand %p118, %p119
      %p121 = pneg %p120
      // Predicated region
      $region9: #{tpu_custom_call.1} parent=5 // pred_check
        _
      $region10: #{tpu_custom_call.1} parent=5 // pred_check_branch
        %123 = sbr.rel (%p120) target = $region12
      $region11: #{tpu_custom_call.1} parent=5 // pred_region
        %s124 = ssub.s32 %s16, 1
      $region12: #{tpu_custom_call.1} parent=5 // pred_fallthru
        _
      %p125 = scmp.lt.s32.totalorder %s16, 4
      // Predicated region
      $region13: #{tpu_custom_call.1} parent=5 // pred_check
        %p126 = pneg %p125
      $region14: #{tpu_custom_call.1} parent=5 // pred_check_branch
        %128 = sbr.rel (%p126) target = $region16
      $region15: #{tpu_custom_call.1} parent=5 // pred_region
        // Predicated region
        $region17: #{tpu_custom_call.1} parent=15 // pred_check
          %p129 = pneg %p50
        $region18: #{tpu_custom_call.1} parent=15 // pred_check_branch
          %131 = sbr.rel (%p129) target = $region20
        $region19: #{tpu_custom_call.1} parent=15 // pred_region
          #allocation9 [shape = 'u32[6]{0}', space=smem, size = 0x18, scoped, tag = 'DMA stride descriptor']
          %s132 = sand.u32 %s40, 1
          %s133 = scalar_lea.sflag [#allocation5], %s132
          %s134 = sand.u32 %s40, 1
          %s135 = smul.addr %s134, 512
          %s136 = scalar_lea.vmem [#allocation4], %s135
          %s137 = smul.u32 2, %s23
          %s138 = smul.u32 16, %s24
          %s140 = ssub.s32 8192, 8192
          %141 = vsyncadd %s133, %s140
          %s142 = smul.addr %s138, 2
          %s143 = smul.addr %s137, 64
          %s144 = sadd.s32 %s142, %s143
          %s145 = smul.addr %s144, 128
          %s146 = scalar_lea.hbm %s1, %s145
          %s148 = sshll.u32 1, 14
          %s149 = sxor.u32 4294967295, %s148
          %s151 = sld [smem:[#allocation0]]
          %s152 = sadd.s32 2, %s151
          %s154 = sshll.u32 7, 26
          %s155 = sxor.u32 4294967295, %s154
          %s156 = sand.u32 0, %s155
          %s157 = sshll.u32 %s152, 26
          %s158 = sor.u32 %s156, %s157
          %s159 = sshll.u32 %s136, 4
          %s160 = int_to_ptr.vmem [resolvable:$true] %s159
          %166 = sst [smem:[#allocation9]] 8192
          %s167 = scalar_lea.smem [#allocation9], 1
          %168 = sst [smem:[%s167]] 4096
          %s169 = scalar_lea.smem [#allocation9], 2
          %170 = sst [smem:[%s169]] 16
          %s171 = scalar_lea.smem [#allocation9], 3
          %172 = sst [smem:[%s171]] 256
          %s173 = scalar_lea.smem [#allocation9], 4
          %174 = sst [smem:[%s173]] 256
          %s175 = scalar_lea.smem [#allocation9], 5
          %176 = sst [smem:[%s175]] 16
          %178 = dma.general %s146, 8192, %s160, %s133, [#allocation8], [#allocation9], %s158, 0
        $region20: #{tpu_custom_call.1} parent=15 // pred_fallthru
          _
        // Predicated region
        $region21: #{tpu_custom_call.1} parent=15 // pred_check
          %p179 = pneg %p76
        $region22: #{tpu_custom_call.1} parent=15 // pred_check_branch
          %181 = sbr.rel (%p179) target = $region24
        $region23: #{tpu_custom_call.1} parent=15 // pred_region
          %s182 = smul.u32 2, %s23
          %p183 = scmp.lt.s32.totalorder %s182, 3
          %s184 = scalar_select %p183, %s182, 3
          %s185 = smul.addr %s184, 32
          %s186 = smul.addr %s185, 8
          %s187 = scalar_lea.vmem %s2, %s186
          %s188 = smul.u32 2, %s23
        $region24: #{tpu_custom_call.1} parent=15 // pred_fallthru
          _
      $region16: #{tpu_custom_call.1} parent=5 // pred_fallthru
        _
      %p189 = scmp.le.s32.totalorder 1, %s16
      %p190 = scmp.lt.s32.totalorder %s16, 5
      %p191 = pnand %p189, %p190
      %p192 = pneg %p191
      // Predicated region
      $region25: #{tpu_custom_call.1} parent=5 // pred_check
        _
      $region26: #{tpu_custom_call.1} parent=5 // pred_check_branch
        %194 = sbr.rel (%p191) target = $region28
      $region27: #{tpu_custom_call.1} parent=5 // pred_region
        %s195 = ssub.s32 %s16, 1
        %s196 = sand.u32 %s43, 1
        %s197 = scalar_lea.sflag [#allocation5], %s196
        %s198 = sand.u32 %s43, 1
        %s199 = smul.addr %s198, 512
        %s200 = scalar_lea.vmem [#allocation4], %s199
        // Predicated region
        $region29: #{tpu_custom_call.1} parent=27 // pred_check
          %p201 = pneg %p56
        $region30: #{tpu_custom_call.1} parent=27 // pred_check_branch
          %203 = sbr.rel (%p201) target = $region32
        $region31: #{tpu_custom_call.1} parent=27 // pred_region
          %204 = dma.done %s197, 8192
        $region32: #{tpu_custom_call.1} parent=27 // pred_fallthru
          _
        %s205 = sand.u32 %s43, 1
        %s206 = scalar_lea.sflag [#allocation5], %s205
        %s207 = sand.u32 %s43, 1
        %s208 = smul.addr %s207, 512
        %s209 = scalar_lea.vmem [#allocation4], %s208
        %p210 = pneg %p56
        %p211 = pneg %p53
        %s212 = smul.u32 2, %s25
        %p213 = scmp.lt.s32.totalorder %s212, 3
        %s214 = scalar_select %p213, %s212, 3
        %s215 = smul.addr %s214, 32
        %s216 = smul.addr %s215, 8
        %s217 = scalar_lea.vmem %s2, %s216
        %p218 = pneg %p82
        %p219 = pneg %p79
        %p220 = pneg %p110
        %p221 = pneg %p107
        %s222 = sand.u32 %s97, 1
        %s223 = scalar_lea.sflag [#allocation6], %s222
        %s224 = sand.u32 %s97, 1
        %s225 = smul.addr %s224, 128
        %s226 = scalar_lea.vmem [#allocation7], %s225
        %s227 = smul.u32 2, %s25
        %s228 = smul.u32 16, %s26
        %s229 = smul.u32 2, %s25
        %p230 = scmp.lt.s32.totalorder %s229, 3
        %s231 = scalar_select %p230, %s229, 3
        %s232 = smul.addr %s231, 32
        %s233 = smul.addr %s232, 8
        %s234 = scalar_lea.vmem %s2, %s233
        %s235 = smul.u32 2, %s25
        %s236 = smul.u32 16, %s26
        %v238 = vld [vmem:[%s200] sm:$0xff]
        %v239 = vld [vmem:[%s200 + $0x8] sm:$0xff]
        %v240 = vld [vmem:[%s200 + $0x10] sm:$0xff]
        %v241 = vld [vmem:[%s200 + $0x18] sm:$0xff]
        %v242 = vld [vmem:[%s200 + $0x20] sm:$0xff]
        %v243 = vld [vmem:[%s200 + $0x28] sm:$0xff]
        %v244 = vld [vmem:[%s200 + $0x30] sm:$0xff]
        %v245 = vld [vmem:[%s200 + $0x38] sm:$0xff]
        %v246 = vld [vmem:[%s200 + $0x40] sm:$0xff]
        %v247 = vld [vmem:[%s200 + $0x48] sm:$0xff]
        %v248 = vld [vmem:[%s200 + $0x50] sm:$0xff]
        %v249 = vld [vmem:[%s200 + $0x58] sm:$0xff]
        %v250 = vld [vmem:[%s200 + $0x60] sm:$0xff]
        %v251 = vld [vmem:[%s200 + $0x68] sm:$0xff]
        %v252 = vld [vmem:[%s200 + $0x70] sm:$0xff]
        %v253 = vld [vmem:[%s200 + $0x78] sm:$0xff]
        %v254 = vld [vmem:[%s200 + $0x80] sm:$0xff]
        %v255 = vld [vmem:[%s200 + $0x88] sm:$0xff]
        %v256 = vld [vmem:[%s200 + $0x90] sm:$0xff]
        %v257 = vld [vmem:[%s200 + $0x98] sm:$0xff]
        %v258 = vld [vmem:[%s200 + $0xa0] sm:$0xff]
        %v259 = vld [vmem:[%s200 + $0xa8] sm:$0xff]
        %v260 = vld [vmem:[%s200 + $0xb0] sm:$0xff]
        %v261 = vld [vmem:[%s200 + $0xb8] sm:$0xff]
        %v262 = vld [vmem:[%s200 + $0xc0] sm:$0xff]
        %v263 = vld [vmem:[%s200 + $0xc8] sm:$0xff]
        %v264 = vld [vmem:[%s200 + $0xd0] sm:$0xff]
        %v265 = vld [vmem:[%s200 + $0xd8] sm:$0xff]
        %v266 = vld [vmem:[%s200 + $0xe0] sm:$0xff]
        %v267 = vld [vmem:[%s200 + $0xe8] sm:$0xff]
        %v268 = vld [vmem:[%s200 + $0xf0] sm:$0xff]
        %v269 = vld [vmem:[%s200 + $0xf8] sm:$0xff]
        %v270 = vmax.f32 %v238, %v239
        %271 = vmax.xlane.f32.xlu0 %v270
        %v272 = vpop.xlane.xlu0 %271
        %v273 = vmax.f32 %v240, %v241
        %274 = vmax.xlane.f32.xlu0 %v273
        %v275 = vpop.xlane.xlu0 %274
        %v276 = vmax.f32 %v242, %v243
        %277 = vmax.xlane.f32.xlu0 %v276
        %v278 = vpop.xlane.xlu0 %277
        %v279 = vmax.f32 %v244, %v245
        %280 = vmax.xlane.f32.xlu0 %v279
        %v281 = vpop.xlane.xlu0 %280
        %v282 = vmax.f32 %v246, %v247
        %283 = vmax.xlane.f32.xlu0 %v282
        %v284 = vpop.xlane.xlu0 %283
        %v285 = vmax.f32 %v248, %v249
        %286 = vmax.xlane.f32.xlu0 %v285
        %v287 = vpop.xlane.xlu0 %286
        %v288 = vmax.f32 %v250, %v251
        %289 = vmax.xlane.f32.xlu0 %v288
        %v290 = vpop.xlane.xlu0 %289
        %v291 = vmax.f32 %v252, %v253
        %292 = vmax.xlane.f32.xlu0 %v291
        %v293 = vpop.xlane.xlu0 %292
        %v294 = vmax.f32 %v254, %v255
        %295 = vmax.xlane.f32.xlu0 %v294
        %v296 = vpop.xlane.xlu0 %295
        %v297 = vmax.f32 %v256, %v257
        %298 = vmax.xlane.f32.xlu0 %v297
        %v299 = vpop.xlane.xlu0 %298
        %v300 = vmax.f32 %v258, %v259
        %301 = vmax.xlane.f32.xlu0 %v300
        %v302 = vpop.xlane.xlu0 %301
        %v303 = vmax.f32 %v260, %v261
        %304 = vmax.xlane.f32.xlu0 %v303
        %v305 = vpop.xlane.xlu0 %304
        %v306 = vmax.f32 %v262, %v263
        %307 = vmax.xlane.f32.xlu0 %v306
        %v308 = vpop.xlane.xlu0 %307
        %v309 = vmax.f32 %v264, %v265
        %310 = vmax.xlane.f32.xlu0 %v309
        %v311 = vpop.xlane.xlu0 %310
        %v312 = vmax.f32 %v266, %v267
        %313 = vmax.xlane.f32.xlu0 %v312
        %v314 = vpop.xlane.xlu0 %313
        %v315 = vmax.f32 %v268, %v269
        %316 = vmax.xlane.f32.xlu0 %v315
        %v317 = vpop.xlane.xlu0 %316
        %v318 = vsub.f32 %v238, %v272
        %v319 = vsub.f32 %v239, %v272
        %v320 = vsub.f32 %v240, %v275
        %v321 = vsub.f32 %v241, %v275
        %v322 = vsub.f32 %v242, %v278
        %v323 = vsub.f32 %v243, %v278
        %v324 = vsub.f32 %v244, %v281
        %v325 = vsub.f32 %v245, %v281
        %v326 = vsub.f32 %v246, %v284
        %v327 = vsub.f32 %v247, %v284
        %v328 = vsub.f32 %v248, %v287
        %v329 = vsub.f32 %v249, %v287
        %v330 = vsub.f32 %v250, %v290
        %v331 = vsub.f32 %v251, %v290
        %v332 = vsub.f32 %v252, %v293
        %v333 = vsub.f32 %v253, %v293
        %v334 = vsub.f32 %v254, %v296
        %v335 = vsub.f32 %v255, %v296
        %v336 = vsub.f32 %v256, %v299
        %v337 = vsub.f32 %v257, %v299
        %v338 = vsub.f32 %v258, %v302
        %v339 = vsub.f32 %v259, %v302
        %v340 = vsub.f32 %v260, %v305
        %v341 = vsub.f32 %v261, %v305
        %v342 = vsub.f32 %v262, %v308
        %v343 = vsub.f32 %v263, %v308
        %v344 = vsub.f32 %v264, %v311
        %v345 = vsub.f32 %v265, %v311
        %v346 = vsub.f32 %v266, %v314
        %v347 = vsub.f32 %v267, %v314
        %v348 = vsub.f32 %v268, %v317
        %v349 = vsub.f32 %v269, %v317
        %v350 = vmul.f32 %v318, 1.442695
        %v351 = vpow.pop %v350
        %v352 = vmul.f32 %v319, 1.442695
        %v353 = vpow.pop %v352
        %v354 = vmul.f32 %v320, 1.442695
        %v355 = vpow.pop %v354
        %v356 = vmul.f32 %v321, 1.442695
        %v357 = vpow.pop %v356
        %v358 = vmul.f32 %v322, 1.442695
        %v359 = vpow.pop %v358
        %v360 = vmul.f32 %v323, 1.442695
        %v361 = vpow.pop %v360
        %v362 = vmul.f32 %v324, 1.442695
        %v363 = vpow.pop %v362
        %v364 = vmul.f32 %v325, 1.442695
        %v365 = vpow.pop %v364
        %v366 = vmul.f32 %v326, 1.442695
        %v367 = vpow.pop %v366
        %v368 = vmul.f32 %v327, 1.442695
        %v369 = vpow.pop %v368
        %v370 = vmul.f32 %v328, 1.442695
        %v371 = vpow.pop %v370
        %v372 = vmul.f32 %v329, 1.442695
        %v373 = vpow.pop %v372
        %v374 = vmul.f32 %v330, 1.442695
        %v375 = vpow.pop %v374
        %v376 = vmul.f32 %v331, 1.442695
        %v377 = vpow.pop %v376
        %v378 = vmul.f32 %v332, 1.442695
        %v379 = vpow.pop %v378
        %v380 = vmul.f32 %v333, 1.442695
        %v381 = vpow.pop %v380
        %v382 = vmul.f32 %v334, 1.442695
        %v383 = vpow.pop %v382
        %v384 = vmul.f32 %v335, 1.442695
        %v385 = vpow.pop %v384
        %v386 = vmul.f32 %v336, 1.442695
        %v387 = vpow.pop %v386
        %v388 = vmul.f32 %v337, 1.442695
        %v389 = vpow.pop %v388
        %v390 = vmul.f32 %v338, 1.442695
        %v391 = vpow.pop %v390
        %v392 = vmul.f32 %v339, 1.442695
        %v393 = vpow.pop %v392
        %v394 = vmul.f32 %v340, 1.442695
        %v395 = vpow.pop %v394
        %v396 = vmul.f32 %v341, 1.442695
        %v397 = vpow.pop %v396
        %v398 = vmul.f32 %v342, 1.442695
        %v399 = vpow.pop %v398
        %v400 = vmul.f32 %v343, 1.442695
        %v401 = vpow.pop %v400
        %v402 = vmul.f32 %v344, 1.442695
        %v403 = vpow.pop %v402
        %v404 = vmul.f32 %v345, 1.442695
        %v405 = vpow.pop %v404
        %v406 = vmul.f32 %v346, 1.442695
        %v407 = vpow.pop %v406
        %v408 = vmul.f32 %v347, 1.442695
        %v409 = vpow.pop %v408
        %v410 = vmul.f32 %v348, 1.442695
        %v411 = vpow.pop %v410
        %v412 = vmul.f32 %v349, 1.442695
        %v413 = vpow.pop %v412
        %v414 = vadd.f32 %v351, %v353
        %415 = vadd.xlane.f32.xlu0 %v414
        %v416 = vpop.xlane.xlu0 %415
        %v417 = vadd.f32 %v355, %v357
        %418 = vadd.xlane.f32.xlu0 %v417
        %v419 = vpop.xlane.xlu0 %418
        %v420 = vadd.f32 %v359, %v361
        %421 = vadd.xlane.f32.xlu0 %v420
        %v422 = vpop.xlane.xlu0 %421
        %v423 = vadd.f32 %v363, %v365
        %424 = vadd.xlane.f32.xlu0 %v423
        %v425 = vpop.xlane.xlu0 %424
        %v426 = vadd.f32 %v367, %v369
        %427 = vadd.xlane.f32.xlu0 %v426
        %v428 = vpop.xlane.xlu0 %427
        %v429 = vadd.f32 %v371, %v373
        %430 = vadd.xlane.f32.xlu0 %v429
        %v431 = vpop.xlane.xlu0 %430
        %v432 = vadd.f32 %v375, %v377
        %433 = vadd.xlane.f32.xlu0 %v432
        %v434 = vpop.xlane.xlu0 %433
        %v435 = vadd.f32 %v379, %v381
        %436 = vadd.xlane.f32.xlu0 %v435
        %v437 = vpop.xlane.xlu0 %436
        %v438 = vadd.f32 %v383, %v385
        %439 = vadd.xlane.f32.xlu0 %v438
        %v440 = vpop.xlane.xlu0 %439
        %v441 = vadd.f32 %v387, %v389
        %442 = vadd.xlane.f32.xlu0 %v441
        %v443 = vpop.xlane.xlu0 %442
        %v444 = vadd.f32 %v391, %v393
        %445 = vadd.xlane.f32.xlu0 %v444
        %v446 = vpop.xlane.xlu0 %445
        %v447 = vadd.f32 %v395, %v397
        %448 = vadd.xlane.f32.xlu0 %v447
        %v449 = vpop.xlane.xlu0 %448
        %v450 = vadd.f32 %v399, %v401
        %451 = vadd.xlane.f32.xlu0 %v450
        %v452 = vpop.xlane.xlu0 %451
        %v453 = vadd.f32 %v403, %v405
        %454 = vadd.xlane.f32.xlu0 %v453
        %v455 = vpop.xlane.xlu0 %454
        %v456 = vadd.f32 %v407, %v409
        %457 = vadd.xlane.f32.xlu0 %v456
        %v458 = vpop.xlane.xlu0 %457
        %v459 = vadd.f32 %v411, %v413
        %460 = vadd.xlane.f32.xlu0 %v459
        %v461 = vpop.xlane.xlu0 %460
        %v462 = vrcp.pop %v416
        %v463 = vrcp.pop %v419
        %v464 = vrcp.pop %v422
        %v465 = vrcp.pop %v425
        %v466 = vrcp.pop %v428
        %v467 = vrcp.pop %v431
        %v468 = vrcp.pop %v434
        %v469 = vrcp.pop %v437
        %v470 = vrcp.pop %v440
        %v471 = vrcp.pop %v443
        %v472 = vrcp.pop %v446
        %v473 = vrcp.pop %v449
        %v474 = vrcp.pop %v452
        %v475 = vrcp.pop %v455
        %v476 = vrcp.pop %v458
        %v477 = vrcp.pop %v461
        %v478 = vmul.f32 %v351, %v462
        %v479 = vmul.f32 %v353, %v462
        %v480 = vmul.f32 %v355, %v463
        %v481 = vmul.f32 %v357, %v463
        %v482 = vmul.f32 %v359, %v464
        %v483 = vmul.f32 %v361, %v464
        %v484 = vmul.f32 %v363, %v465
        %v485 = vmul.f32 %v365, %v465
        %v486 = vmul.f32 %v367, %v466
        %v487 = vmul.f32 %v369, %v466
        %v488 = vmul.f32 %v371, %v467
        %v489 = vmul.f32 %v373, %v467
        %v490 = vmul.f32 %v375, %v468
        %v491 = vmul.f32 %v377, %v468
        %v492 = vmul.f32 %v379, %v469
        %v493 = vmul.f32 %v381, %v469
        %v494 = vmul.f32 %v383, %v470
        %v495 = vmul.f32 %v385, %v470
        %v496 = vmul.f32 %v387, %v471
        %v497 = vmul.f32 %v389, %v471
        %v498 = vmul.f32 %v391, %v472
        %v499 = vmul.f32 %v393, %v472
        %v500 = vmul.f32 %v395, %v473
        %v501 = vmul.f32 %v397, %v473
        %v502 = vmul.f32 %v399, %v474
        %v503 = vmul.f32 %v401, %v474
        %v504 = vmul.f32 %v403, %v475
        %v505 = vmul.f32 %v405, %v475
        %v506 = vmul.f32 %v407, %v476
        %v507 = vmul.f32 %v409, %v476
        %v508 = vmul.f32 %v411, %v477
        %v509 = vmul.f32 %v413, %v477
        %v510 = vpack.c.bf16 %v480, %v478
        %v511 = vpack.c.bf16 %v481, %v479
        %v512 = vpack.c.bf16 %v484, %v482
        %v513 = vpack.c.bf16 %v485, %v483
        %v514 = vpack.c.bf16 %v488, %v486
        %v515 = vpack.c.bf16 %v489, %v487
        %v516 = vpack.c.bf16 %v492, %v490
        %v517 = vpack.c.bf16 %v493, %v491
        %v518 = vpack.c.bf16 %v496, %v494
        %v519 = vpack.c.bf16 %v497, %v495
        %v520 = vpack.c.bf16 %v500, %v498
        %v521 = vpack.c.bf16 %v501, %v499
        %v522 = vpack.c.bf16 %v504, %v502
        %v523 = vpack.c.bf16 %v505, %v503
        %v524 = vpack.c.bf16 %v508, %v506
        %v525 = vpack.c.bf16 %v509, %v507
        %v526 = vld [vmem:[%s234] sm:$0xff]
        %v527 = vld [vmem:[%s234 + $0x8] sm:$0xff]
        %v528 = vld [vmem:[%s234 + $0x10] sm:$0xff]
        %v529 = vld [vmem:[%s234 + $0x18] sm:$0xff]
        %v530 = vld [vmem:[%s234 + $0x20] sm:$0xff]
        %v531 = vld [vmem:[%s234 + $0x28] sm:$0xff]
        %v532 = vld [vmem:[%s234 + $0x30] sm:$0xff]
        %v533 = vld [vmem:[%s234 + $0x38] sm:$0xff]
        %v534 = vld [vmem:[%s234 + $0x40] sm:$0xff]
        %v535 = vld [vmem:[%s234 + $0x48] sm:$0xff]
        %v536 = vld [vmem:[%s234 + $0x50] sm:$0xff]
        %v537 = vld [vmem:[%s234 + $0x58] sm:$0xff]
        %v538 = vld [vmem:[%s234 + $0x60] sm:$0xff]
        %v539 = vld [vmem:[%s234 + $0x68] sm:$0xff]
        %v540 = vld [vmem:[%s234 + $0x70] sm:$0xff]
        %v541 = vld [vmem:[%s234 + $0x78] sm:$0xff]
        %v542 = vld [vmem:[%s234 + $0x80] sm:$0xff]
        %v543 = vld [vmem:[%s234 + $0x88] sm:$0xff]
        %v544 = vld [vmem:[%s234 + $0x90] sm:$0xff]
        %v545 = vld [vmem:[%s234 + $0x98] sm:$0xff]
        %v546 = vld [vmem:[%s234 + $0xa0] sm:$0xff]
        %v547 = vld [vmem:[%s234 + $0xa8] sm:$0xff]
        %v548 = vld [vmem:[%s234 + $0xb0] sm:$0xff]
        %v549 = vld [vmem:[%s234 + $0xb8] sm:$0xff]
        %v550 = vld [vmem:[%s234 + $0xc0] sm:$0xff]
        %v551 = vld [vmem:[%s234 + $0xc8] sm:$0xff]
        %v552 = vld [vmem:[%s234 + $0xd0] sm:$0xff]
        %v553 = vld [vmem:[%s234 + $0xd8] sm:$0xff]
        %v554 = vld [vmem:[%s234 + $0xe0] sm:$0xff]
        %v555 = vld [vmem:[%s234 + $0xe8] sm:$0xff]
        %v556 = vld [vmem:[%s234 + $0xf0] sm:$0xff]
        %v557 = vld [vmem:[%s234 + $0xf8] sm:$0xff]
        %v558 = vpack.c.bf16 %v527, %v526
        %v559 = vpack.c.bf16 %v529, %v528
        %v560 = vpack.c.bf16 %v531, %v530
        %v561 = vpack.c.bf16 %v533, %v532
        %v562 = vpack.c.bf16 %v535, %v534
        %v563 = vpack.c.bf16 %v537, %v536
        %v564 = vpack.c.bf16 %v539, %v538
        %v565 = vpack.c.bf16 %v541, %v540
        %v566 = vpack.c.bf16 %v543, %v542
        %v567 = vpack.c.bf16 %v545, %v544
        %v568 = vpack.c.bf16 %v547, %v546
        %v569 = vpack.c.bf16 %v549, %v548
        %v570 = vpack.c.bf16 %v551, %v550
        %v571 = vpack.c.bf16 %v553, %v552
        %v572 = vpack.c.bf16 %v555, %v554
        %v573 = vpack.c.bf16 %v557, %v556
        %574 = vmatprep.subr.bf16.mxu0 0
        %575 = vmatpush1.bf16.msra.mxu0 %v558
        %576 = vmatprep.subr.bf16.mxu0 0
        %577 = vmatpush1.bf16.msra.mxu0 %v559
        %578 = vmatprep.subr.bf16.mxu0 0
        %579 = vmatpush1.bf16.msra.mxu0 %v560
        %580 = vmatprep.subr.bf16.mxu0 0
        %581 = vmatpush1.bf16.msra.mxu0 %v561
        %582 = vmatprep.subr.bf16.mxu0 0
        %583 = vmatpush1.bf16.msra.mxu0 %v562
        %584 = vmatprep.subr.bf16.mxu0 0
        %585 = vmatpush1.bf16.msra.mxu0 %v563
        %586 = vmatprep.subr.bf16.mxu0 0
        %587 = vmatpush1.bf16.msra.mxu0 %v564
        %588 = vmatprep.subr.bf16.mxu0 0
        %589 = vmatpush1.bf16.msra.mxu0 %v565
        %590 = vmatprep.subr.bf16.mxu0 0
        %591 = vmatpush1.bf16.msra.mxu0 %v566
        %592 = vmatprep.subr.bf16.mxu0 0
        %593 = vmatpush1.bf16.msra.mxu0 %v567
        %594 = vmatprep.subr.bf16.mxu0 0
        %595 = vmatpush1.bf16.msra.mxu0 %v568
        %596 = vmatprep.subr.bf16.mxu0 0
        %597 = vmatpush1.bf16.msra.mxu0 %v569
        %598 = vmatprep.subr.bf16.mxu0 0
        %599 = vmatpush1.bf16.msra.mxu0 %v570
        %600 = vmatprep.subr.bf16.mxu0 0
        %601 = vmatpush1.bf16.msra.mxu0 %v571
        %602 = vmatprep.subr.bf16.mxu0 0
        %603 = vmatpush1.bf16.msra.mxu0 %v572
        %604 = vmatprep.subr.bf16.mxu0 0
        %605 = vmatpush1.bf16.msra.mxu0 %v573
        %606 = vmatprep.mubr.bf16.mxu0 %v511
        %607 = vmatmul.mubr.bf16.gmra.mrb[0].mxu0 %v510
        %v608 = vpop.f32.mrb[0].mxu0
        %v609 = vadd.f32 0.0, %v608
        %v610 = vpop.f32.mrb[0].mxu0
        %v611 = vpop.f32.mrb[0].mxu0
        %v612 = vadd.f32 0.0, %v611
        %v613 = vpop.f32.mrb[0].mxu0
        %614 = vmatprep.mubr.bf16.mxu0 %v513
        %615 = vmatmul.mubr.bf16.gmra.mrb[0].mxu0 %v512
        %v616 = vpop.f32.mrb[0].mxu0
        %v617 = vadd.f32 0.0, %v616
        %v618 = vpop.f32.mrb[0].mxu0
        %v619 = vpop.f32.mrb[0].mxu0
        %v620 = vadd.f32 0.0, %v619
        %v621 = vpop.f32.mrb[0].mxu0
        %622 = vmatprep.mubr.bf16.mxu0 %v515
        %623 = vmatmul.mubr.bf16.gmra.mrb[0].mxu0 %v514
        %v624 = vpop.f32.mrb[0].mxu0
        %v625 = vadd.f32 0.0, %v624
        %v626 = vpop.f32.mrb[0].mxu0
        %v627 = vpop.f32.mrb[0].mxu0
        %v628 = vadd.f32 0.0, %v627
        %v629 = vpop.f32.mrb[0].mxu0
        %630 = vmatprep.mubr.bf16.mxu0 %v517
        %631 = vmatmul.mubr.bf16.gmra.mrb[0].mxu0 %v516
        %v632 = vpop.f32.mrb[0].mxu0
        %v633 = vadd.f32 0.0, %v632
        %v634 = vpop.f32.mrb[0].mxu0
        %v635 = vpop.f32.mrb[0].mxu0
        %v636 = vadd.f32 0.0, %v635
        %v637 = vpop.f32.mrb[0].mxu0
        %638 = vmatprep.mubr.bf16.mxu0 %v519
        %639 = vmatmul.mubr.bf16.gmra.mrb[0].mxu0 %v518
        %v640 = vpop.f32.mrb[0].mxu0
        %v641 = vadd.f32 0.0, %v640
        %v642 = vpop.f32.mrb[0].mxu0
        %v643 = vpop.f32.mrb[0].mxu0
        %v644 = vadd.f32 0.0, %v643
        %v645 = vpop.f32.mrb[0].mxu0
        %646 = vmatprep.mubr.bf16.mxu0 %v521
        %647 = vmatmul.mubr.bf16.gmra.mrb[0].mxu0 %v520
        %v648 = vpop.f32.mrb[0].mxu0
        %v649 = vadd.f32 0.0, %v648
        %v650 = vpop.f32.mrb[0].mxu0
        %v651 = vpop.f32.mrb[0].mxu0
        %v652 = vadd.f32 0.0, %v651
        %v653 = vpop.f32.mrb[0].mxu0
        %654 = vmatprep.mubr.bf16.mxu0 %v523
        %655 = vmatmul.mubr.bf16.gmra.mrb[0].mxu0 %v522
        %v656 = vpop.f32.mrb[0].mxu0
        %v657 = vadd.f32 0.0, %v656
        %v658 = vpop.f32.mrb[0].mxu0
        %v659 = vpop.f32.mrb[0].mxu0
        %v660 = vadd.f32 0.0, %v659
        %v661 = vpop.f32.mrb[0].mxu0
        %662 = vmatprep.mubr.bf16.mxu0 %v525
        %663 = vmatmul.mubr.bf16.gmra.mrb[0].mxu0 %v524
        %v664 = vpop.f32.mrb[0].mxu0
        %v665 = vadd.f32 0.0, %v664
        %v666 = vpop.f32.mrb[0].mxu0
        %v667 = vpop.f32.mrb[0].mxu0
        %v668 = vadd.f32 0.0, %v667
        %v669 = vpop.f32.mrb[0].mxu0
        %670 = vdwg.mxu0
        %s671 = scalar_lea.vmem %s200, 256 [#allocation4]
        %v672 = vld [vmem:[%s671] sm:$0xff]
        %v673 = vld [vmem:[%s671 + $0x8] sm:$0xff]
        %v674 = vld [vmem:[%s671 + $0x10] sm:$0xff]
        %v675 = vld [vmem:[%s671 + $0x18] sm:$0xff]
        %v676 = vld [vmem:[%s671 + $0x20] sm:$0xff]
        %v677 = vld [vmem:[%s671 + $0x28] sm:$0xff]
        %v678 = vld [vmem:[%s671 + $0x30] sm:$0xff]
        %v679 = vld [vmem:[%s671 + $0x38] sm:$0xff]
        %v680 = vld [vmem:[%s671 + $0x40] sm:$0xff]
        %v681 = vld [vmem:[%s671 + $0x48] sm:$0xff]
        %v682 = vld [vmem:[%s671 + $0x50] sm:$0xff]
        %v683 = vld [vmem:[%s671 + $0x58] sm:$0xff]
        %v684 = vld [vmem:[%s671 + $0x60] sm:$0xff]
        %v685 = vld [vmem:[%s671 + $0x68] sm:$0xff]
        %v686 = vld [vmem:[%s671 + $0x70] sm:$0xff]
        %v687 = vld [vmem:[%s671 + $0x78] sm:$0xff]
        %v688 = vld [vmem:[%s671 + $0x80] sm:$0xff]
        %v689 = vld [vmem:[%s671 + $0x88] sm:$0xff]
        %v690 = vld [vmem:[%s671 + $0x90] sm:$0xff]
        %v691 = vld [vmem:[%s671 + $0x98] sm:$0xff]
        %v692 = vld [vmem:[%s671 + $0xa0] sm:$0xff]
        %v693 = vld [vmem:[%s671 + $0xa8] sm:$0xff]
        %v694 = vld [vmem:[%s671 + $0xb0] sm:$0xff]
        %v695 = vld [vmem:[%s671 + $0xb8] sm:$0xff]
        %v696 = vld [vmem:[%s671 + $0xc0] sm:$0xff]
        %v697 = vld [vmem:[%s671 + $0xc8] sm:$0xff]
        %v698 = vld [vmem:[%s671 + $0xd0] sm:$0xff]
        %v699 = vld [vmem:[%s671 + $0xd8] sm:$0xff]
        %v700 = vld [vmem:[%s671 + $0xe0] sm:$0xff]
        %v701 = vld [vmem:[%s671 + $0xe8] sm:$0xff]
        %v702 = vld [vmem:[%s671 + $0xf0] sm:$0xff]
        %v703 = vld [vmem:[%s671 + $0xf8] sm:$0xff]
        %v704 = vmax.f32 %v672, %v673
        %705 = vmax.xlane.f32.xlu0 %v704
        %v706 = vpop.xlane.xlu0 %705
        %v707 = vmax.f32 %v674, %v675
        %708 = vmax.xlane.f32.xlu0 %v707
        %v709 = vpop.xlane.xlu0 %708
        %v710 = vmax.f32 %v676, %v677
        %711 = vmax.xlane.f32.xlu0 %v710
        %v712 = vpop.xlane.xlu0 %711
        %v713 = vmax.f32 %v678, %v679
        %714 = vmax.xlane.f32.xlu0 %v713
        %v715 = vpop.xlane.xlu0 %714
        %v716 = vmax.f32 %v680, %v681
        %717 = vmax.xlane.f32.xlu0 %v716
        %v718 = vpop.xlane.xlu0 %717
        %v719 = vmax.f32 %v682, %v683
        %720 = vmax.xlane.f32.xlu0 %v719
        %v721 = vpop.xlane.xlu0 %720
        %v722 = vmax.f32 %v684, %v685
        %723 = vmax.xlane.f32.xlu0 %v722
        %v724 = vpop.xlane.xlu0 %723
        %v725 = vmax.f32 %v686, %v687
        %726 = vmax.xlane.f32.xlu0 %v725
        %v727 = vpop.xlane.xlu0 %726
        %v728 = vmax.f32 %v688, %v689
        %729 = vmax.xlane.f32.xlu0 %v728
        %v730 = vpop.xlane.xlu0 %729
        %v731 = vmax.f32 %v690, %v691
        %732 = vmax.xlane.f32.xlu0 %v731
        %v733 = vpop.xlane.xlu0 %732
        %v734 = vmax.f32 %v692, %v693
        %735 = vmax.xlane.f32.xlu0 %v734
        %v736 = vpop.xlane.xlu0 %735
        %v737 = vmax.f32 %v694, %v695
        %738 = vmax.xlane.f32.xlu0 %v737
        %v739 = vpop.xlane.xlu0 %738
        %v740 = vmax.f32 %v696, %v697
        %741 = vmax.xlane.f32.xlu0 %v740
        %v742 = vpop.xlane.xlu0 %741
        %v743 = vmax.f32 %v698, %v699
        %744 = vmax.xlane.f32.xlu0 %v743
        %v745 = vpop.xlane.xlu0 %744
        %v746 = vmax.f32 %v700, %v701
        %747 = vmax.xlane.f32.xlu0 %v746
        %v748 = vpop.xlane.xlu0 %747
        %v749 = vmax.f32 %v702, %v703
        %750 = vmax.xlane.f32.xlu0 %v749
        %v751 = vpop.xlane.xlu0 %750
        %v752 = vsub.f32 %v672, %v706
        %v753 = vsub.f32 %v673, %v706
        %v754 = vsub.f32 %v674, %v709
        %v755 = vsub.f32 %v675, %v709
        %v756 = vsub.f32 %v676, %v712
        %v757 = vsub.f32 %v677, %v712
        %v758 = vsub.f32 %v678, %v715
        %v759 = vsub.f32 %v679, %v715
        %v760 = vsub.f32 %v680, %v718
        %v761 = vsub.f32 %v681, %v718
        %v762 = vsub.f32 %v682, %v721
        %v763 = vsub.f32 %v683, %v721
        %v764 = vsub.f32 %v684, %v724
        %v765 = vsub.f32 %v685, %v724
        %v766 = vsub.f32 %v686, %v727
        %v767 = vsub.f32 %v687, %v727
        %v768 = vsub.f32 %v688, %v730
        %v769 = vsub.f32 %v689, %v730
        %v770 = vsub.f32 %v690, %v733
        %v771 = vsub.f32 %v691, %v733
        %v772 = vsub.f32 %v692, %v736
        %v773 = vsub.f32 %v693, %v736
        %v774 = vsub.f32 %v694, %v739
        %v775 = vsub.f32 %v695, %v739
        %v776 = vsub.f32 %v696, %v742
        %v777 = vsub.f32 %v697, %v742
        %v778 = vsub.f32 %v698, %v745
        %v779 = vsub.f32 %v699, %v745
        %v780 = vsub.f32 %v700, %v748
        %v781 = vsub.f32 %v701, %v748
        %v782 = vsub.f32 %v702, %v751
        %v783 = vsub.f32 %v703, %v751
        %v784 = vmul.f32 %v752, 1.442695
        %v785 = vpow.pop %v784
        %v786 = vmul.f32 %v753, 1.442695
        %v787 = vpow.pop %v786
        %v788 = vmul.f32 %v754, 1.442695
        %v789 = vpow.pop %v788
        %v790 = vmul.f32 %v755, 1.442695
        %v791 = vpow.pop %v790
        %v792 = vmul.f32 %v756, 1.442695
        %v793 = vpow.pop %v792
        %v794 = vmul.f32 %v757, 1.442695
        %v795 = vpow.pop %v794
        %v796 = vmul.f32 %v758, 1.442695
        %v797 = vpow.pop %v796
        %v798 = vmul.f32 %v759, 1.442695
        %v799 = vpow.pop %v798
        %v800 = vmul.f32 %v760, 1.442695
        %v801 = vpow.pop %v800
        %v802 = vmul.f32 %v761, 1.442695
        %v803 = vpow.pop %v802
        %v804 = vmul.f32 %v762, 1.442695
        %v805 = vpow.pop %v804
        %v806 = vmul.f32 %v763, 1.442695
        %v807 = vpow.pop %v806
        %v808 = vmul.f32 %v764, 1.442695
        %v809 = vpow.pop %v808
        %v810 = vmul.f32 %v765, 1.442695
        %v811 = vpow.pop %v810
        %v812 = vmul.f32 %v766, 1.442695
        %v813 = vpow.pop %v812
        %v814 = vmul.f32 %v767, 1.442695
        %v815 = vpow.pop %v814
        %v816 = vmul.f32 %v768, 1.442695
        %v817 = vpow.pop %v816
        %v818 = vmul.f32 %v769, 1.442695
        %v819 = vpow.pop %v818
        %v820 = vmul.f32 %v770, 1.442695
        %v821 = vpow.pop %v820
        %v822 = vmul.f32 %v771, 1.442695
        %v823 = vpow.pop %v822
        %v824 = vmul.f32 %v772, 1.442695
        %v825 = vpow.pop %v824
        %v826 = vmul.f32 %v773, 1.442695
        %v827 = vpow.pop %v826
        %v828 = vmul.f32 %v774, 1.442695
        %v829 = vpow.pop %v828
        %v830 = vmul.f32 %v775, 1.442695
        %v831 = vpow.pop %v830
        %v832 = vmul.f32 %v776, 1.442695
        %v833 = vpow.pop %v832
        %v834 = vmul.f32 %v777, 1.442695
        %v835 = vpow.pop %v834
        %v836 = vmul.f32 %v778, 1.442695
        %v837 = vpow.pop %v836
        %v838 = vmul.f32 %v779, 1.442695
        %v839 = vpow.pop %v838
        %v840 = vmul.f32 %v780, 1.442695
        %v841 = vpow.pop %v840
        %v842 = vmul.f32 %v781, 1.442695
        %v843 = vpow.pop %v842
        %v844 = vmul.f32 %v782, 1.442695
        %v845 = vpow.pop %v844
        %v846 = vmul.f32 %v783, 1.442695
        %v847 = vpow.pop %v846
        %v848 = vadd.f32 %v785, %v787
        %849 = vadd.xlane.f32.xlu0 %v848
        %v850 = vpop.xlane.xlu0 %849
        %v851 = vadd.f32 %v789, %v791
        %852 = vadd.xlane.f32.xlu0 %v851
        %v853 = vpop.xlane.xlu0 %852
        %v854 = vadd.f32 %v793, %v795
        %855 = vadd.xlane.f32.xlu0 %v854
        %v856 = vpop.xlane.xlu0 %855
        %v857 = vadd.f32 %v797, %v799
        %858 = vadd.xlane.f32.xlu0 %v857
        %v859 = vpop.xlane.xlu0 %858
        %v860 = vadd.f32 %v801, %v803
        %861 = vadd.xlane.f32.xlu0 %v860
        %v862 = vpop.xlane.xlu0 %861
        %v863 = vadd.f32 %v805, %v807
        %864 = vadd.xlane.f32.xlu0 %v863
        %v865 = vpop.xlane.xlu0 %864
        %v866 = vadd.f32 %v809, %v811
        %867 = vadd.xlane.f32.xlu0 %v866
        %v868 = vpop.xlane.xlu0 %867
        %v869 = vadd.f32 %v813, %v815
        %870 = vadd.xlane.f32.xlu0 %v869
        %v871 = vpop.xlane.xlu0 %870
        %v872 = vadd.f32 %v817, %v819
        %873 = vadd.xlane.f32.xlu0 %v872
        %v874 = vpop.xlane.xlu0 %873
        %v875 = vadd.f32 %v821, %v823
        %876 = vadd.xlane.f32.xlu0 %v875
        %v877 = vpop.xlane.xlu0 %876
        %v878 = vadd.f32 %v825, %v827
        %879 = vadd.xlane.f32.xlu0 %v878
        %v880 = vpop.xlane.xlu0 %879
        %v881 = vadd.f32 %v829, %v831
        %882 = vadd.xlane.f32.xlu0 %v881
        %v883 = vpop.xlane.xlu0 %882
        %v884 = vadd.f32 %v833, %v835
        %885 = vadd.xlane.f32.xlu0 %v884
        %v886 = vpop.xlane.xlu0 %885
        %v887 = vadd.f32 %v837, %v839
        %888 = vadd.xlane.f32.xlu0 %v887
        %v889 = vpop.xlane.xlu0 %888
        %v890 = vadd.f32 %v841, %v843
        %891 = vadd.xlane.f32.xlu0 %v890
        %v892 = vpop.xlane.xlu0 %891
        %v893 = vadd.f32 %v845, %v847
        %894 = vadd.xlane.f32.xlu0 %v893
        %v895 = vpop.xlane.xlu0 %894
        %v896 = vrcp.pop %v850
        %v897 = vrcp.pop %v853
        %v898 = vrcp.pop %v856
        %v899 = vrcp.pop %v859
        %v900 = vrcp.pop %v862
        %v901 = vrcp.pop %v865
        %v902 = vrcp.pop %v868
        %v903 = vrcp.pop %v871
        %v904 = vrcp.pop %v874
        %v905 = vrcp.pop %v877
        %v906 = vrcp.pop %v880
        %v907 = vrcp.pop %v883
        %v908 = vrcp.pop %v886
        %v909 = vrcp.pop %v889
        %v910 = vrcp.pop %v892
        %v911 = vrcp.pop %v895
        %v912 = vmul.f32 %v785, %v896
        %v913 = vmul.f32 %v787, %v896
        %v914 = vmul.f32 %v789, %v897
        %v915 = vmul.f32 %v791, %v897
        %v916 = vmul.f32 %v793, %v898
        %v917 = vmul.f32 %v795, %v898
        %v918 = vmul.f32 %v797, %v899
        %v919 = vmul.f32 %v799, %v899
        %v920 = vmul.f32 %v801, %v900
        %v921 = vmul.f32 %v803, %v900
        %v922 = vmul.f32 %v805, %v901
        %v923 = vmul.f32 %v807, %v901
        %v924 = vmul.f32 %v809, %v902
        %v925 = vmul.f32 %v811, %v902
        %v926 = vmul.f32 %v813, %v903
        %v927 = vmul.f32 %v815, %v903
        %v928 = vmul.f32 %v817, %v904
        %v929 = vmul.f32 %v819, %v904
        %v930 = vmul.f32 %v821, %v905
        %v931 = vmul.f32 %v823, %v905
        %v932 = vmul.f32 %v825, %v906
        %v933 = vmul.f32 %v827, %v906
        %v934 = vmul.f32 %v829, %v907
        %v935 = vmul.f32 %v831, %v907
        %v936 = vmul.f32 %v833, %v908
        %v937 = vmul.f32 %v835, %v908
        %v938 = vmul.f32 %v837, %v909
        %v939 = vmul.f32 %v839, %v909
        %v940 = vmul.f32 %v841, %v910
        %v941 = vmul.f32 %v843, %v910
        %v942 = vmul.f32 %v845, %v911
        %v943 = vmul.f32 %v847, %v911
        %v944 = vpack.c.bf16 %v914, %v912
        %v945 = vpack.c.bf16 %v915, %v913
        %v946 = vpack.c.bf16 %v918, %v916
        %v947 = vpack.c.bf16 %v919, %v917
        %v948 = vpack.c.bf16 %v922, %v920
        %v949 = vpack.c.bf16 %v923, %v921
        %v950 = vpack.c.bf16 %v926, %v924
        %v951 = vpack.c.bf16 %v927, %v925
        %v952 = vpack.c.bf16 %v930, %v928
        %v953 = vpack.c.bf16 %v931, %v929
        %v954 = vpack.c.bf16 %v934, %v932
        %v955 = vpack.c.bf16 %v935, %v933
        %v956 = vpack.c.bf16 %v938, %v936
        %v957 = vpack.c.bf16 %v939, %v937
        %v958 = vpack.c.bf16 %v942, %v940
        %v959 = vpack.c.bf16 %v943, %v941
        %s960 = scalar_lea.vmem %s234, 256
        %v961 = vld [vmem:[%s960] sm:$0xff]
        %v962 = vld [vmem:[%s960 + $0x8] sm:$0xff]
        %v963 = vld [vmem:[%s960 + $0x10] sm:$0xff]
        %v964 = vld [vmem:[%s960 + $0x18] sm:$0xff]
        %v965 = vld [vmem:[%s960 + $0x20] sm:$0xff]
        %v966 = vld [vmem:[%s960 + $0x28] sm:$0xff]
        %v967 = vld [vmem:[%s960 + $0x30] sm:$0xff]
        %v968 = vld [vmem:[%s960 + $0x38] sm:$0xff]
        %v969 = vld [vmem:[%s960 + $0x40] sm:$0xff]
        %v970 = vld [vmem:[%s960 + $0x48] sm:$0xff]
        %v971 = vld [vmem:[%s960 + $0x50] sm:$0xff]
        %v972 = vld [vmem:[%s960 + $0x58] sm:$0xff]
        %v973 = vld [vmem:[%s960 + $0x60] sm:$0xff]
        %v974 = vld [vmem:[%s960 + $0x68] sm:$0xff]
        %v975 = vld [vmem:[%s960 + $0x70] sm:$0xff]
        %v976 = vld [vmem:[%s960 + $0x78] sm:$0xff]
        %v977 = vld [vmem:[%s960 + $0x80] sm:$0xff]
        %v978 = vld [vmem:[%s960 + $0x88] sm:$0xff]
        %v979 = vld [vmem:[%s960 + $0x90] sm:$0xff]
        %v980 = vld [vmem:[%s960 + $0x98] sm:$0xff]
        %v981 = vld [vmem:[%s960 + $0xa0] sm:$0xff]
        %v982 = vld [vmem:[%s960 + $0xa8] sm:$0xff]
        %v983 = vld [vmem:[%s960 + $0xb0] sm:$0xff]
        %v984 = vld [vmem:[%s960 + $0xb8] sm:$0xff]
        %v985 = vld [vmem:[%s960 + $0xc0] sm:$0xff]
        %v986 = vld [vmem:[%s960 + $0xc8] sm:$0xff]
        %v987 = vld [vmem:[%s960 + $0xd0] sm:$0xff]
        %v988 = vld [vmem:[%s960 + $0xd8] sm:$0xff]
        %v989 = vld [vmem:[%s960 + $0xe0] sm:$0xff]
        %v990 = vld [vmem:[%s960 + $0xe8] sm:$0xff]
        %v991 = vld [vmem:[%s960 + $0xf0] sm:$0xff]
        %v992 = vld [vmem:[%s960 + $0xf8] sm:$0xff]
        %v993 = vpack.c.bf16 %v962, %v961
        %v994 = vpack.c.bf16 %v964, %v963
        %v995 = vpack.c.bf16 %v966, %v965
        %v996 = vpack.c.bf16 %v968, %v967
        %v997 = vpack.c.bf16 %v970, %v969
        %v998 = vpack.c.bf16 %v972, %v971
        %v999 = vpack.c.bf16 %v974, %v973
        %v1000 = vpack.c.bf16 %v976, %v975
        %v1001 = vpack.c.bf16 %v978, %v977
        %v1002 = vpack.c.bf16 %v980, %v979
        %v1003 = vpack.c.bf16 %v982, %v981
        %v1004 = vpack.c.bf16 %v984, %v983
        %v1005 = vpack.c.bf16 %v986, %v985
        %v1006 = vpack.c.bf16 %v988, %v987
        %v1007 = vpack.c.bf16 %v990, %v989
        %v1008 = vpack.c.bf16 %v992, %v991
        %1009 = vmatprep.subr.bf16.mxu0 0
        %1010 = vmatpush1.bf16.msra.mxu0 %v993
        %1011 = vmatprep.subr.bf16.mxu0 0
        %1012 = vmatpush1.bf16.msra.mxu0 %v994
        %1013 = vmatprep.subr.bf16.mxu0 0
        %1014 = vmatpush1.bf16.msra.mxu0 %v995
        %1015 = vmatprep.subr.bf16.mxu0 0
        %1016 = vmatpush1.bf16.msra.mxu0 %v996
        %1017 = vmatprep.subr.bf16.mxu0 0
        %1018 = vmatpush1.bf16.msra.mxu0 %v997
        %1019 = vmatprep.subr.bf16.mxu0 0
        %1020 = vmatpush1.bf16.msra.mxu0 %v998
        %1021 = vmatprep.subr.bf16.mxu0 0
        %1022 = vmatpush1.bf16.msra.mxu0 %v999
        %1023 = vmatprep.subr.bf16.mxu0 0
        %1024 = vmatpush1.bf16.msra.mxu0 %v1000
        %1025 = vmatprep.subr.bf16.mxu0 0
        %1026 = vmatpush1.bf16.msra.mxu0 %v1001
        %1027 = vmatprep.subr.bf16.mxu0 0
        %1028 = vmatpush1.bf16.msra.mxu0 %v1002
        %1029 = vmatprep.subr.bf16.mxu0 0
        %1030 = vmatpush1.bf16.msra.mxu0 %v1003
        %1031 = vmatprep.subr.bf16.mxu0 0
        %1032 = vmatpush1.bf16.msra.mxu0 %v1004
        %1033 = vmatprep.subr.bf16.mxu0 0
        %1034 = vmatpush1.bf16.msra.mxu0 %v1005
        %1035 = vmatprep.subr.bf16.mxu0 0
        %1036 = vmatpush1.bf16.msra.mxu0 %v1006
        %1037 = vmatprep.subr.bf16.mxu0 0
        %1038 = vmatpush1.bf16.msra.mxu0 %v1007
        %1039 = vmatprep.subr.bf16.mxu0 0
        %1040 = vmatpush1.bf16.msra.mxu0 %v1008
        %1041 = vmatprep.mubr.bf16.mxu0 %v945
        %1042 = vmatmul.mubr.bf16.gmra.mrb[0].mxu0 %v944
        %v1043 = vpop.f32.mrb[0].mxu0
        %v1044 = vadd.f32 0.0, %v1043
        %v1045 = vpop.f32.mrb[0].mxu0
        %v1046 = vpop.f32.mrb[0].mxu0
        %v1047 = vadd.f32 0.0, %v1046
        %v1048 = vpop.f32.mrb[0].mxu0
        %1049 = vmatprep.mubr.bf16.mxu0 %v947
        %1050 = vmatmul.mubr.bf16.gmra.mrb[0].mxu0 %v946
        %v1051 = vpop.f32.mrb[0].mxu0
        %v1052 = vadd.f32 0.0, %v1051
        %v1053 = vpop.f32.mrb[0].mxu0
        %v1054 = vpop.f32.mrb[0].mxu0
        %v1055 = vadd.f32 0.0, %v1054
        %v1056 = vpop.f32.mrb[0].mxu0
        %1057 = vmatprep.mubr.bf16.mxu0 %v949
        %1058 = vmatmul.mubr.bf16.gmra.mrb[0].mxu0 %v948
        %v1059 = vpop.f32.mrb[0].mxu0
        %v1060 = vadd.f32 0.0, %v1059
        %v1061 = vpop.f32.mrb[0].mxu0
        %v1062 = vpop.f32.mrb[0].mxu0
        %v1063 = vadd.f32 0.0, %v1062
        %v1064 = vpop.f32.mrb[0].mxu0
        %1065 = vmatprep.mubr.bf16.mxu0 %v951
        %1066 = vmatmul.mubr.bf16.gmra.mrb[0].mxu0 %v950
        %v1067 = vpop.f32.mrb[0].mxu0
        %v1068 = vadd.f32 0.0, %v1067
        %v1069 = vpop.f32.mrb[0].mxu0
        %v1070 = vpop.f32.mrb[0].mxu0
        %v1071 = vadd.f32 0.0, %v1070
        %v1072 = vpop.f32.mrb[0].mxu0
        %1073 = vmatprep.mubr.bf16.mxu0 %v953
        %1074 = vmatmul.mubr.bf16.gmra.mrb[0].mxu0 %v952
        %v1075 = vpop.f32.mrb[0].mxu0
        %v1076 = vadd.f32 0.0, %v1075
        %v1077 = vpop.f32.mrb[0].mxu0
        %v1078 = vpop.f32.mrb[0].mxu0
        %v1079 = vadd.f32 0.0, %v1078
        %v1080 = vpop.f32.mrb[0].mxu0
        %1081 = vmatprep.mubr.bf16.mxu0 %v955
        %1082 = vmatmul.mubr.bf16.gmra.mrb[0].mxu0 %v954
        %v1083 = vpop.f32.mrb[0].mxu0
        %v1084 = vadd.f32 0.0, %v1083
        %v1085 = vpop.f32.mrb[0].mxu0
        %v1086 = vpop.f32.mrb[0].mxu0
        %v1087 = vadd.f32 0.0, %v1086
        %v1088 = vpop.f32.mrb[0].mxu0
        %1089 = vmatprep.mubr.bf16.mxu0 %v957
        %1090 = vmatmul.mubr.bf16.gmra.mrb[0].mxu0 %v956
        %v1091 = vpop.f32.mrb[0].mxu0
        %v1092 = vadd.f32 0.0, %v1091
        %v1093 = vpop.f32.mrb[0].mxu0
        %v1094 = vpop.f32.mrb[0].mxu0
        %v1095 = vadd.f32 0.0, %v1094
        %v1096 = vpop.f32.mrb[0].mxu0
        %1097 = vmatprep.mubr.bf16.mxu0 %v959
        %1098 = vmatmul.mubr.bf16.gmra.mrb[0].mxu0 %v958
        %v1099 = vpop.f32.mrb[0].mxu0
        %v1100 = vadd.f32 0.0, %v1099
        %v1101 = vpop.f32.mrb[0].mxu0
        %v1102 = vpop.f32.mrb[0].mxu0
        %v1103 = vadd.f32 0.0, %v1102
        %v1104 = vpop.f32.mrb[0].mxu0
        %1105 = vdwg.mxu0
        %1122 = vrot.lane.b32.xlu0 %v1044, 64
        %v1123 = vpop.permute.xlu0 %1122
        %1124 = vrot.lane.b32.xlu0 %v1047, 64
        %v1125 = vpop.permute.xlu0 %1124
        %1126 = vrot.lane.b32.xlu0 %v1052, 64
        %v1127 = vpop.permute.xlu0 %1126
        %1128 = vrot.lane.b32.xlu0 %v1055, 64
        %v1129 = vpop.permute.xlu0 %1128
        %1130 = vrot.lane.b32.xlu0 %v1060, 64
        %v1131 = vpop.permute.xlu0 %1130
        %1132 = vrot.lane.b32.xlu0 %v1063, 64
        %v1133 = vpop.permute.xlu0 %1132
        %1134 = vrot.lane.b32.xlu0 %v1068, 64
        %v1135 = vpop.permute.xlu0 %1134
        %1136 = vrot.lane.b32.xlu0 %v1071, 64
        %v1137 = vpop.permute.xlu0 %1136
        %1138 = vrot.lane.b32.xlu0 %v1076, 64
        %v1139 = vpop.permute.xlu0 %1138
        %1140 = vrot.lane.b32.xlu0 %v1079, 64
        %v1141 = vpop.permute.xlu0 %1140
        %1142 = vrot.lane.b32.xlu0 %v1084, 64
        %v1143 = vpop.permute.xlu0 %1142
        %1144 = vrot.lane.b32.xlu0 %v1087, 64
        %v1145 = vpop.permute.xlu0 %1144
        %1146 = vrot.lane.b32.xlu0 %v1092, 64
        %v1147 = vpop.permute.xlu0 %1146
        %1148 = vrot.lane.b32.xlu0 %v1095, 64
        %v1149 = vpop.permute.xlu0 %1148
        %1150 = vrot.lane.b32.xlu0 %v1100, 64
        %v1151 = vpop.permute.xlu0 %1150
        %1152 = vrot.lane.b32.xlu0 %v1103, 64
        %v1153 = vpop.permute.xlu0 %1152
        %vm1170 = vcmask 523264
        %v1171 = vsel %vm1170, %v609, %v1123
        %v1172 = vsel %vm1170, %v612, %v1125
        %v1173 = vsel %vm1170, %v617, %v1127
        %v1174 = vsel %vm1170, %v620, %v1129
        %v1175 = vsel %vm1170, %v625, %v1131
        %v1176 = vsel %vm1170, %v628, %v1133
        %v1177 = vsel %vm1170, %v633, %v1135
        %v1178 = vsel %vm1170, %v636, %v1137
        %v1179 = vsel %vm1170, %v641, %v1139
        %v1180 = vsel %vm1170, %v644, %v1141
        %v1181 = vsel %vm1170, %v649, %v1143
        %v1182 = vsel %vm1170, %v652, %v1145
        %v1183 = vsel %vm1170, %v657, %v1147
        %v1184 = vsel %vm1170, %v660, %v1149
        %v1185 = vsel %vm1170, %v665, %v1151
        %v1186 = vsel %vm1170, %v668, %v1153
        %1187 = vst [vmem:[%s226] sm:$0xff] %v1171
        %1188 = vst [vmem:[%s226 + $0x8] sm:$0xff] %v1172
        %1189 = vst [vmem:[%s226 + $0x10] sm:$0xff] %v1173
        %1190 = vst [vmem:[%s226 + $0x18] sm:$0xff] %v1174
        %1191 = vst [vmem:[%s226 + $0x20] sm:$0xff] %v1175
        %1192 = vst [vmem:[%s226 + $0x28] sm:$0xff] %v1176
        %1193 = vst [vmem:[%s226 + $0x30] sm:$0xff] %v1177
        %1194 = vst [vmem:[%s226 + $0x38] sm:$0xff] %v1178
        %1195 = vst [vmem:[%s226 + $0x40] sm:$0xff] %v1179
        %1196 = vst [vmem:[%s226 + $0x48] sm:$0xff] %v1180
        %1197 = vst [vmem:[%s226 + $0x50] sm:$0xff] %v1181
        %1198 = vst [vmem:[%s226 + $0x58] sm:$0xff] %v1182
        %1199 = vst [vmem:[%s226 + $0x60] sm:$0xff] %v1183
        %1200 = vst [vmem:[%s226 + $0x68] sm:$0xff] %v1184
        %1201 = vst [vmem:[%s226 + $0x70] sm:$0xff] %v1185
        %1202 = vst [vmem:[%s226 + $0x78] sm:$0xff] %v1186
        %s1203 = sand.u32 %s97, 1
        %s1204 = scalar_lea.sflag [#allocation6], %s1203
        %s1205 = sand.u32 %s97, 1
        %s1206 = smul.addr %s1205, 128
        %s1207 = scalar_lea.vmem [#allocation7], %s1206
        // Predicated region
        $region33: #{tpu_custom_call.1} parent=27 // pred_check
          %p1208 = pneg %p107
        $region34: #{tpu_custom_call.1} parent=27 // pred_check_branch
          %1210 = sbr.rel (%p1208) target = $region36
        $region35: #{tpu_custom_call.1} parent=27 // pred_region
          %s1211 = smul.u32 16, %s26
          %s1213 = ssub.s32 2048, 2048
          %1214 = vsyncadd %s1204, %s1213
          %s1215 = smul.addr %s25, 32
          %s1216 = sadd.s32 %s1211, %s1215
          %s1217 = smul.addr %s1216, 128
          %s1218 = scalar_lea.hbm %s3, %s1217
          %s1219 = sshll.u32 %s1207, 4
          %s1220 = int_to_ptr.vmem [resolvable:$true] %s1219
          %1225 = dma.vmem_to_hbm [thread:$0]  %s1220, 2048, %s1218, %s1204, 128, 128, 8
        $region36: #{tpu_custom_call.1} parent=27 // pred_fallthru
          _
      $region28: #{tpu_custom_call.1} parent=5 // pred_fallthru
        _
      %p1226 = scmp.le.s32.totalorder 2, %s16
      // Predicated region
      $region37: #{tpu_custom_call.1} parent=5 // pred_check
        %p1227 = pneg %p1226
      $region38: #{tpu_custom_call.1} parent=5 // pred_check_branch
        %1229 = sbr.rel (%p1227) target = $region40
      $region39: #{tpu_custom_call.1} parent=5 // pred_region
        %s1230 = ssub.s32 %s16, 2
        // Predicated region
        $region41: #{tpu_custom_call.1} parent=39 // pred_check
          %p1231 = pneg %p113
        $region42: #{tpu_custom_call.1} parent=39 // pred_check_branch
          %1233 = sbr.rel (%p1231) target = $region44
        $region43: #{tpu_custom_call.1} parent=39 // pred_region
          %s1234 = sand.u32 %s98, 1
          %s1235 = scalar_lea.sflag [#allocation6], %s1234
          %s1236 = sand.u32 %s98, 1
          %s1237 = smul.addr %s1236, 128
          %s1238 = scalar_lea.vmem [#allocation7], %s1237
          %1239 = dma.done %s1235, 2048
        $region44: #{tpu_custom_call.1} parent=39 // pred_fallthru
          _
      $region40: #{tpu_custom_call.1} parent=5 // pred_fallthru
        _
    $region6: #{tpu_custom_call.1} parent=1 // loop_footer
      %s20 = sadd.s32 1, %s16
    $region7: #{tpu_custom_call.1} parent=1 // loop_footer_branch
      %15 = sbr.rel target = $region3
    $region8: #{tpu_custom_call.1} parent=1 // loop_exit
      _
    %1240 = vsyncpa [#allocation5], 1
    %s1241 = scalar_lea.sflag [#allocation5], 1
    %1242 = vsyncpa %s1241, 1
    %1243 = vsyncpa [#allocation6], 1
    %s1244 = scalar_lea.sflag [#allocation6], 1
    %1245 = vsyncpa %s1244, 1

</llo_original>
